<compile_context>
chip_gen: v5e
topology: v5e:2x2
jax: 0.10.0
libtpu: 0.0.40
codegen_flags: <defaults>
</compile_context>

<pallas_src>
import functools

import jax
import jax.numpy as jnp
from jax.experimental import pallas as pl
from jax.experimental.pallas import tpu as pltpu

# ----------------------------- hyper-parameters --------------------------------
BATCH = 2
IMG_HW = 16          # input image spatial size (NCHW: (B, 3, 16, 16))
C_FEAT = 128         # stand-in for the 512-channel MobileNetV2 feature map
EMBED = 32           # embed_size
EMBED_PAD = 128      # lane-dense output width (sliced back to EMBED outside)
KH = KW = 3
STRIDE = 2
PAD = 1
K_RAW = 3 * KH * KW  # 27 = in_channels * kh * kw
K_PAD = 32           # contraction dim padded to a sublane multiple


# ------------------------------- fused kernel ----------------------------------
def _img_encoder_kernel(col_ref, cw_ref, cb_ref, fw_ref, fb_ref, o_ref):
    # Single invocation over the whole flattened batch: col is (B*R, Kp) bf16.
    col = col_ref[...]
    # Stand-in CNN trunk: conv-as-matmul (bf16 operands, f32 accumulate) + ReLU6.
    feat = jnp.dot(col, cw_ref[...], preferred_element_type=jnp.float32)
    feat = jnp.clip(feat + cb_ref[...], 0.0, 6.0)        # f32 elementwise (v5e-safe)
    # self.fc: Linear(C_FEAT, embed_size) + Tanh, fused — feat never leaves VMEM.
    out = jnp.dot(feat.astype(jnp.bfloat16), fw_ref[...],
                  preferred_element_type=jnp.float32)
    o_ref[...] = jnp.tanh(out + fb_ref[...]).astype(o_ref.dtype)   # (B*R, EMBED_PAD)


def img_attention_encoder(params, image):
    """image: (B, 3, H, W) NCHW  ->  img_feature: (B, R, EMBED)."""
    col, Ho, Wo = _im2col(image, KH, KW, STRIDE, PAD)     # (B, R, K_PAD) bf16
    B, R, Kp = col.shape
    M = B * R
    col2d = col.reshape(M, Kp)                            # flatten batch: M = B*R

    out = pl.pallas_call(
        _img_encoder_kernel,
        out_shape=jax.ShapeDtypeStruct((M, EMBED_PAD), jnp.float32),
        # No grid: one kernel step, full arrays resident in VMEM (tiny footprint,
        # well under every generation's VMEM limit).
        in_specs=[pl.BlockSpec(memory_space=pltpu.MemorySpace.VMEM)] * 5,
        out_specs=pl.BlockSpec(memory_space=pltpu.MemorySpace.VMEM),
    )(col2d, params["conv_w"], params["conv_b"], params["fc_w"], params["fc_b"])

    # Padded lanes (>= EMBED) are zero-weight columns -> tanh(0)=0; slice them
    # off here (consumers that accept the 128-lane slab can skip this copy).
    return out.reshape(B, R, EMBED_PAD)[:, :, :EMBED]


# -------------------------------- glue: im2col ----------------------------------
def _im2col(img, kh, kw, stride, pad):
    """NCHW image -> (B, Ho*Wo, K_PAD) bf16 patches, channel-major / region-major
    layout (matches .view(B, C, R).transpose(1, 2) channel-last layout after the
    conv-as-matmul).  Emitted already K_PAD-wide and bf16 so no extra wrapper-side
    pad/cast buffers hit HBM."""
    B, C, H, W = img.shape
    x = jnp.pad(img, ((0, 0), (0, 0), (pad, pad), (pad, pad)))
    Ho = (H + 2 * pad - kh) // stride + 1
    Wo = (W + 2 * pad - kw) // stride + 1
    cols = []
    for i in range(kh):
        for j in range(kw):
            cols.append(x[:, :, i:i + stride * Ho:stride, j:j + stride * Wo:stride])
    col = jnp.stack(cols, axis=-1)                                  # (B, C, Ho, Wo, kh*kw)
    col = jnp.transpose(col, (0, 2, 3, 1, 4)).reshape(B, Ho * Wo, C * kh * kw)
    col = jnp.pad(col, ((0, 0), (0, 0), (0, K_PAD - C * kh * kw)))  # zero K-padding
    return col.astype(jnp.bfloat16), Ho, Wo


# ------------------------------ parameter init ----------------------------------
def init_params(key):
    k0, k1, k2 = jax.random.split(key, 3)
    # Stand-in conv (TODO(synk): pretrained MobileNetV2 weights not loadable;
    # if real OIHW torch weights are ever loaded they must be permuted to this
    # (C, kh, kw)-flattened (K_RAW, C_FEAT) layout).
    conv_w = jax.random.normal(k0, (K_RAW, C_FEAT), jnp.float32) / jnp.sqrt(float(K_RAW))
    conv_w = jnp.pad(conv_w, ((0, K_PAD - K_RAW), (0, 0))).astype(jnp.bfloat16)
    conv_b = jnp.zeros((1, C_FEAT), jnp.float32)
    # self.fc = Linear(C_FEAT, EMBED) + Tanh; padded to 128 output lanes so the
    # kernel's HBM store is unmasked (padded columns are zero, sliced outside).
    fc_w = jax.random.normal(k1, (C_FEAT, EMBED), jnp.float32) / jnp.sqrt(float(C_FEAT))
    fc_b = jax.random.normal(k2, (EMBED,), jnp.float32) / jnp.sqrt(float(C_FEAT))
    fc_w = jnp.pad(fc_w, ((0, 0), (0, EMBED_PAD - EMBED))).astype(jnp.bfloat16)
    fc_b = jnp.pad(fc_b, (0, EMBED_PAD - EMBED)).reshape(1, EMBED_PAD)
    return {"conv_w": conv_w, "conv_b": conv_b, "fc_w": fc_w, "fc_b": fc_b}


# --------------------------- pure-JAX f32 reference ------------------------------
def _reference(params, image):
    col, _, _ = _im2col(image, KH, KW, STRIDE, PAD)
    col = col.astype(jnp.float32)
    cw = params["conv_w"].astype(jnp.float32)
    fw = params["fc_w"].astype(jnp.float32)
    feat = jnp.clip(col @ cw + params["conv_b"], 0.0, 6.0)
    return jnp.tanh(feat @ fw + params["fc_b"])[:, :, :EMBED]


# ------------------------------------ main ---------------------------------------
if __name__ == "__main__":
    key = jax.random.PRNGKey(0)
    kp, ki = jax.random.split(key)
    params = init_params(kp)
    image = jax.random.normal(ki, (BATCH, 3, IMG_HW, IMG_HW), jnp.float32)

    out = jax.jit(functools.partial(img_attention_encoder, params))(image)
    jax.block_until_ready(out)

    num_regions = ((IMG_HW + 2 * PAD - KH) // STRIDE + 1) ** 2
    assert out.shape == (BATCH, num_regions, EMBED), out.shape
    assert bool(jnp.all(jnp.isfinite(out)))

    # bf16-operand kernel vs f32 reference: tolerance-checked, not assumed.
    ref = _reference(params, image)
    max_err = float(jnp.max(jnp.abs(out - ref)))
    assert max_err < 5e-2, max_err

    print("KERNEL_OK")
</pallas_src>

<mosaic_0001>
module attributes {stable_mosaic.version = 11 : i64} {
  func.func @_img_encoder_kernel(%arg0: memref<128x32xbf16, #tpu.memory_space<vmem>>, %arg1: memref<32x128xbf16, #tpu.memory_space<vmem>>, %arg2: memref<1x128xf32, #tpu.memory_space<vmem>>, %arg3: memref<128x128xbf16, #tpu.memory_space<vmem>>, %arg4: memref<1x128xf32, #tpu.memory_space<vmem>>, %arg5: memref<128x128xf32, #tpu.memory_space<vmem>>) attributes {dimension_semantics = [], scalar_prefetch = 0 : i64, scratch_operands = 0 : i64, tpu.core_type = #tpu.core_type<tc>} {
    %c0 = arith.constant 0 : index
    %c0_0 = arith.constant 0 : index
    %0 = vector.load %arg0[%c0, %c0_0] : memref<128x32xbf16, #tpu.memory_space<vmem>>, vector<128x32xbf16>
    %c0_1 = arith.constant 0 : index
    %c0_2 = arith.constant 0 : index
    %1 = vector.load %arg1[%c0_1, %c0_2] : memref<32x128xbf16, #tpu.memory_space<vmem>>, vector<32x128xbf16>
    %cst = arith.constant dense<0.000000e+00> : vector<128x128xf32>
    %2 = tpu.matmul %0, %1, %cst {dimension_numbers = #tpu.dot_dimension_numbers<[1], [0], [0], [1], [0, 0, 1, 1], [], []>} : vector<128x32xbf16>, vector<32x128xbf16>, vector<128x128xf32> -> vector<128x128xf32>
    %c0_3 = arith.constant 0 : index
    %c0_4 = arith.constant 0 : index
    %3 = vector.load %arg2[%c0_3, %c0_4] : memref<1x128xf32, #tpu.memory_space<vmem>>, vector<1x128xf32>
    %4 = vector.broadcast %3 : vector<1x128xf32> to vector<128x128xf32>
    %5 = arith.addf %2, %4 : vector<128x128xf32>
    %cst_5 = arith.constant 0.000000e+00 : f32
    %cst_6 = arith.constant 6.000000e+00 : f32
    %6 = vector.broadcast %cst_5 : f32 to vector<128x128xf32>
    %7 = arith.maximumf %6, %5 : vector<128x128xf32>
    %8 = vector.broadcast %cst_6 : f32 to vector<128x128xf32>
    %9 = arith.minimumf %8, %7 : vector<128x128xf32>
    %10 = arith.truncf %9 : vector<128x128xf32> to vector<128x128xbf16>
    %c0_7 = arith.constant 0 : index
    %c0_8 = arith.constant 0 : index
    %11 = vector.load %arg3[%c0_7, %c0_8] : memref<128x128xbf16, #tpu.memory_space<vmem>>, vector<128x128xbf16>
    %cst_9 = arith.constant dense<0.000000e+00> : vector<128x128xf32>
    %12 = tpu.matmul %10, %11, %cst_9 {dimension_numbers = #tpu.dot_dimension_numbers<[1], [0], [0], [1], [0, 0, 1, 1], [], []>} : vector<128x128xbf16>, vector<128x128xbf16>, vector<128x128xf32> -> vector<128x128xf32>
    %c0_10 = arith.constant 0 : index
    %c0_11 = arith.constant 0 : index
    %13 = vector.load %arg4[%c0_10, %c0_11] : memref<1x128xf32, #tpu.memory_space<vmem>>, vector<1x128xf32>
    %14 = vector.broadcast %13 : vector<1x128xf32> to vector<128x128xf32>
    %15 = arith.addf %12, %14 : vector<128x128xf32>
    %16 = math.tanh %15 : vector<128x128xf32>
    %c0_12 = arith.constant 0 : index
    %c0_13 = arith.constant 0 : index
    %17 = vector.load %arg5[%c0_12, %c0_13] : memref<128x128xf32, #tpu.memory_space<vmem>>, vector<128x128xf32>
    tpu.vector_store %arg5[%c0_12, %c0_13], %16 {strides = array<i32>} : memref<128x128xf32, #tpu.memory_space<vmem>>, vector<128x128xf32>,
    return
  }
}

</mosaic_0001>

<llo_original>
// kernel: img_attention_encoder.1
$region0: #{img_attention_encoder.1}
  #allocation0 [shape = 'u32[]', space=smem, size = 0x4, offset = 0x4, fixed_abs, tag = 'smem constant byte address 0x4 - core index']
  #allocation1 [shape = 'u32[72,128]{1,0:T(1,128)}', space=vmem, size = 0x9000, scoped, tag = 'internal scratch']
  %s0 = inlined_call_operand.vmem [shape: bf16[128,32], index: 0, kind: input, shape index: {}]
  %s1 = inlined_call_operand.vmem [shape: bf16[32,128], index: 1, kind: input, shape index: {}]
  %s2 = inlined_call_operand.vmem [shape: f32[1,128], index: 2, kind: input, shape index: {}]
  %s3 = inlined_call_operand.vmem [shape: bf16[128,128], index: 3, kind: input, shape index: {}]
  %s4 = inlined_call_operand.vmem [shape: f32[1,128], index: 4, kind: input, shape index: {}]
  %s5 = inlined_call_operand.vmem [shape: f32[128,128], index: 5, kind: output, shape index: {}]
  %s6 = sld [smem:[#allocation0]]
  $region30: #{img_attention_encoder.1} parent=0
    _
  %s8 = ssub.s32 1, %s6
  %s9 = scalar_select 0, %s8, %s6
  // Predicated region
  $region2: #{img_attention_encoder.1} parent=0 // pred_check
    _
  $region3: #{img_attention_encoder.1} parent=0 // pred_check_branch
    %11 = sbr.rel (0) target = $region5
  $region4: #{img_attention_encoder.1} parent=0 // pred_region
    _
  $region5: #{img_attention_encoder.1} parent=0 // pred_fallthru
    _
  // Predicated region
  $region6: #{img_attention_encoder.1} parent=0 // pred_check
    _
  $region7: #{img_attention_encoder.1} parent=0 // pred_check_branch
    %13 = sbr.rel (0) target = $region9
  $region8: #{img_attention_encoder.1} parent=0 // pred_region
    _
  $region9: #{img_attention_encoder.1} parent=0 // pred_fallthru
    _
  // Predicated region
  $region10: #{img_attention_encoder.1} parent=0 // pred_check
    _
  $region11: #{img_attention_encoder.1} parent=0 // pred_check_branch
    %15 = sbr.rel (0) target = $region13
  $region12: #{img_attention_encoder.1} parent=0 // pred_region
    _
  $region13: #{img_attention_encoder.1} parent=0 // pred_fallthru
    _
  // Predicated region
  $region14: #{img_attention_encoder.1} parent=0 // pred_check
    _
  $region15: #{img_attention_encoder.1} parent=0 // pred_check_branch
    %17 = sbr.rel (0) target = $region17
  $region16: #{img_attention_encoder.1} parent=0 // pred_region
    _
  $region17: #{img_attention_encoder.1} parent=0 // pred_fallthru
    _
  // Predicated region
  $region18: #{img_attention_encoder.1} parent=0 // pred_check
    _
  $region19: #{img_attention_encoder.1} parent=0 // pred_check_branch
    %19 = sbr.rel (0) target = $region21
  $region20: #{img_attention_encoder.1} parent=0 // pred_region
    _
  $region21: #{img_attention_encoder.1} parent=0 // pred_fallthru
    _
  %v21 = vld [vmem:[%s0] sm:$0xf]
  %v22 = vld [vmem:[%s0 + $0x4] sm:$0xf]
  %v23 = vld [vmem:[%s0 + $0x8] sm:$0xf]
  %v24 = vld [vmem:[%s0 + $0xc] sm:$0xf]
  %v25 = vld [vmem:[%s0 + $0x10] sm:$0xf]
  %v26 = vld [vmem:[%s0 + $0x14] sm:$0xf]
  %v27 = vld [vmem:[%s0 + $0x18] sm:$0xf]
  %v28 = vld [vmem:[%s0 + $0x1c] sm:$0xf]
  %v29 = vld [vmem:[%s0 + $0x20] sm:$0xf]
  %v30 = vld [vmem:[%s0 + $0x24] sm:$0xf]
  %v31 = vld [vmem:[%s0 + $0x28] sm:$0xf]
  %v32 = vld [vmem:[%s0 + $0x2c] sm:$0xf]
  %v33 = vld [vmem:[%s0 + $0x30] sm:$0xf]
  %v34 = vld [vmem:[%s0 + $0x34] sm:$0xf]
  %v35 = vld [vmem:[%s0 + $0x38] sm:$0xf]
  %v36 = vld [vmem:[%s0 + $0x3c] sm:$0xf]
  %v37 = vld [vmem:[%s1] sm:$0xf]
  %v38 = vld [vmem:[%s1 + $0x4] sm:$0xf]
  %v39 = vld [vmem:[%s1 + $0x8] sm:$0xf]
  %v40 = vld [vmem:[%s1 + $0xc] sm:$0xf]
  %v41 = vld [vmem:[%s2] sm:$0x1]
  %v43 = vperm.slane %v41, 0
  %v61 = vunpack.c.l.b16 %v21
  %v62 = vunpack.c.l.b16 %v22
  %v63 = vunpack.c.l.b16 %v23
  %v64 = vunpack.c.l.b16 %v24
  %v65 = vunpack.c.l.b16 %v25
  %v66 = vunpack.c.l.b16 %v26
  %v67 = vunpack.c.l.b16 %v27
  %v68 = vunpack.c.l.b16 %v28
  %v69 = vunpack.c.l.b16 %v29
  %v70 = vunpack.c.l.b16 %v30
  %v71 = vunpack.c.l.b16 %v31
  %v72 = vunpack.c.l.b16 %v32
  %v73 = vunpack.c.l.b16 %v33
  %v74 = vunpack.c.l.b16 %v34
  %v75 = vunpack.c.l.b16 %v35
  %v76 = vunpack.c.l.b16 %v36
  %v77 = vpack.c.b16 %v62, %v61
  %v78 = vpack.c.b16 %v64, %v63
  %v79 = vpack.c.b16 %v66, %v65
  %v80 = vpack.c.b16 %v68, %v67
  %v81 = vpack.c.b16 %v70, %v69
  %v82 = vpack.c.b16 %v72, %v71
  %v83 = vpack.c.b16 %v74, %v73
  %v84 = vpack.c.b16 %v76, %v75
  %v89 = vunpack.c.l.b16 %v37
  %v90 = vunpack.c.l.b16 %v38
  %v91 = vunpack.c.l.b16 %v39
  %v92 = vunpack.c.l.b16 %v40
  %v93 = vpack.c.b16 %v90, %v89
  %v94 = vpack.c.b16 %v92, %v91
  %vm97 = vcmask 261120
  %v99 = vsel %vm97, %v77, 0
  %v102 = vsel %vm97, %v78, 0
  %v105 = vsel %vm97, %v79, 0
  %v108 = vsel %vm97, %v80, 0
  %v111 = vsel %vm97, %v81, 0
  %v114 = vsel %vm97, %v82, 0
  %v117 = vsel %vm97, %v83, 0
  %v120 = vsel %vm97, %v84, 0
  %122 = vmatpush.bf16.msra.mxu0 0
  %123 = vmatpush.bf16.msra.mxu0 0
  %124 = vmatpush.bf16.msra.mxu0 0
  %125 = vmatpush.bf16.msra.mxu0 0
  %126 = vmatpush.bf16.msra.mxu0 0
  %127 = vmatpush.bf16.msra.mxu0 0
  %128 = vmatpush.bf16.msra.mxu0 %v94
  %129 = vmatpush.bf16.msra.mxu0 %v93
  %130 = vmatmul.bf16.gmra.mxu0 %v99
  %v131 = vpop.f32.mrf.mxu0
  %v132 = vadd.f32 %v43, %v131
  %v133 = vpop.f32.mrf.mxu0
  %v134 = vadd.f32 %v43, %v133
  %135 = vmatmul.bf16.gmra.mxu0 %v102
  %v136 = vpop.f32.mrf.mxu0
  %v137 = vadd.f32 %v43, %v136
  %v138 = vpop.f32.mrf.mxu0
  %v139 = vadd.f32 %v43, %v138
  %140 = vmatmul.bf16.gmra.mxu0 %v105
  %v141 = vpop.f32.mrf.mxu0
  %v142 = vadd.f32 %v43, %v141
  %v143 = vpop.f32.mrf.mxu0
  %v144 = vadd.f32 %v43, %v143
  %145 = vmatmul.bf16.gmra.mxu0 %v108
  %v146 = vpop.f32.mrf.mxu0
  %v147 = vadd.f32 %v43, %v146
  %v148 = vpop.f32.mrf.mxu0
  %v149 = vadd.f32 %v43, %v148
  %150 = vmatmul.bf16.gmra.mxu0 %v111
  %v151 = vpop.f32.mrf.mxu0
  %v152 = vadd.f32 %v43, %v151
  %v153 = vpop.f32.mrf.mxu0
  %v154 = vadd.f32 %v43, %v153
  %155 = vmatmul.bf16.gmra.mxu0 %v114
  %v156 = vpop.f32.mrf.mxu0
  %v157 = vadd.f32 %v43, %v156
  %v158 = vpop.f32.mrf.mxu0
  %v159 = vadd.f32 %v43, %v158
  %160 = vmatmul.bf16.gmra.mxu0 %v117
  %v161 = vpop.f32.mrf.mxu0
  %v162 = vadd.f32 %v43, %v161
  %v163 = vpop.f32.mrf.mxu0
  %v164 = vadd.f32 %v43, %v163
  %165 = vmatmul.bf16.gmra.mxu0 %v120
  %v166 = vpop.f32.mrf.mxu0
  %v167 = vadd.f32 %v43, %v166
  %v168 = vpop.f32.mrf.mxu0
  %v169 = vadd.f32 %v43, %v168
  %170 = vdwg.mxu0
  %v171 = vmax.f32 %v132, 0.0
  %v172 = vmax.f32 %v134, 0.0
  %v173 = vmax.f32 %v137, 0.0
  %v174 = vmax.f32 %v139, 0.0
  %v175 = vmax.f32 %v142, 0.0
  %v176 = vmax.f32 %v144, 0.0
  %v177 = vmax.f32 %v147, 0.0
  %v178 = vmax.f32 %v149, 0.0
  %v179 = vmax.f32 %v152, 0.0
  %v180 = vmax.f32 %v154, 0.0
  %v181 = vmax.f32 %v157, 0.0
  %v182 = vmax.f32 %v159, 0.0
  %v183 = vmax.f32 %v162, 0.0
  %v184 = vmax.f32 %v164, 0.0
  %v185 = vmax.f32 %v167, 0.0
  %v186 = vmax.f32 %v169, 0.0
  %v187 = vmin.f32 %v171, 6.0
  %v188 = vmin.f32 %v172, 6.0
  %v189 = vmin.f32 %v173, 6.0
  %v190 = vmin.f32 %v174, 6.0
  %v191 = vmin.f32 %v175, 6.0
  %v192 = vmin.f32 %v176, 6.0
  %v193 = vmin.f32 %v177, 6.0
  %v194 = vmin.f32 %v178, 6.0
  %v195 = vmin.f32 %v179, 6.0
  %v196 = vmin.f32 %v180, 6.0
  %v197 = vmin.f32 %v181, 6.0
  %v198 = vmin.f32 %v182, 6.0
  %v199 = vmin.f32 %v183, 6.0
  %v200 = vmin.f32 %v184, 6.0
  %v201 = vmin.f32 %v185, 6.0
  %v202 = vmin.f32 %v186, 6.0
  %v203 = vpack.c.bf16 %v188, %v187
  %v204 = vpack.c.bf16 %v190, %v189
  %v205 = vpack.c.bf16 %v192, %v191
  %v206 = vpack.c.bf16 %v194, %v193
  %v207 = vpack.c.bf16 %v196, %v195
  %v208 = vpack.c.bf16 %v198, %v197
  %v209 = vpack.c.bf16 %v200, %v199
  %v210 = vpack.c.bf16 %v202, %v201
  %v211 = vld [vmem:[%s3] sm:$0xf]
  %v212 = vld [vmem:[%s3 + $0x4] sm:$0xf]
  %v213 = vld [vmem:[%s3 + $0x8] sm:$0xf]
  %v214 = vld [vmem:[%s3 + $0xc] sm:$0xf]
  %v215 = vld [vmem:[%s3 + $0x10] sm:$0xf]
  %v216 = vld [vmem:[%s3 + $0x14] sm:$0xf]
  %v217 = vld [vmem:[%s3 + $0x18] sm:$0xf]
  %v218 = vld [vmem:[%s3 + $0x1c] sm:$0xf]
  %v219 = vld [vmem:[%s3 + $0x20] sm:$0xf]
  %v220 = vld [vmem:[%s3 + $0x24] sm:$0xf]
  %v221 = vld [vmem:[%s3 + $0x28] sm:$0xf]
  %v222 = vld [vmem:[%s3 + $0x2c] sm:$0xf]
  %v223 = vld [vmem:[%s3 + $0x30] sm:$0xf]
  %v224 = vld [vmem:[%s3 + $0x34] sm:$0xf]
  %v225 = vld [vmem:[%s3 + $0x38] sm:$0xf]
  %v226 = vld [vmem:[%s3 + $0x3c] sm:$0xf]
  %v227 = vld [vmem:[%s4] sm:$0x1]
  %v229 = vperm.slane %v227, 0
  %v247 = vunpack.c.l.b16 %v211
  %v248 = vunpack.c.l.b16 %v212
  %v249 = vunpack.c.l.b16 %v213
  %v250 = vunpack.c.l.b16 %v214
  %v251 = vunpack.c.l.b16 %v215
  %v252 = vunpack.c.l.b16 %v216
  %v253 = vunpack.c.l.b16 %v217
  %v254 = vunpack.c.l.b16 %v218
  %v255 = vunpack.c.l.b16 %v219
  %v256 = vunpack.c.l.b16 %v220
  %v257 = vunpack.c.l.b16 %v221
  %v258 = vunpack.c.l.b16 %v222
  %v259 = vunpack.c.l.b16 %v223
  %v260 = vunpack.c.l.b16 %v224
  %v261 = vunpack.c.l.b16 %v225
  %v262 = vunpack.c.l.b16 %v226
  %v263 = vpack.c.b16 %v248, %v247
  %v264 = vpack.c.b16 %v250, %v249
  %v265 = vpack.c.b16 %v252, %v251
  %v266 = vpack.c.b16 %v254, %v253
  %v267 = vpack.c.b16 %v256, %v255
  %v268 = vpack.c.b16 %v258, %v257
  %v269 = vpack.c.b16 %v260, %v259
  %v270 = vpack.c.b16 %v262, %v261
  %279 = vmatpush.bf16.msra.mxu0 %v270
  %280 = vmatpush.bf16.msra.mxu0 %v269
  %281 = vmatpush.bf16.msra.mxu0 %v268
  %282 = vmatpush.bf16.msra.mxu0 %v267
  %283 = vmatpush.bf16.msra.mxu0 %v266
  %284 = vmatpush.bf16.msra.mxu0 %v265
  %285 = vmatpush.bf16.msra.mxu0 %v264
  %286 = vmatpush.bf16.msra.mxu0 %v263
  %287 = vmatmul.bf16.gmra.mxu0 %v203
  %v288 = vpop.f32.mrf.mxu0
  %v289 = vadd.f32 %v229, %v288
  %v290 = vpop.f32.mrf.mxu0
  %v291 = vadd.f32 %v229, %v290
  %292 = vmatmul.bf16.gmra.mxu0 %v204
  %v293 = vpop.f32.mrf.mxu0
  %v294 = vadd.f32 %v229, %v293
  %v295 = vpop.f32.mrf.mxu0
  %v296 = vadd.f32 %v229, %v295
  %297 = vmatmul.bf16.gmra.mxu0 %v205
  %v298 = vpop.f32.mrf.mxu0
  %v299 = vadd.f32 %v229, %v298
  %v300 = vpop.f32.mrf.mxu0
  %v301 = vadd.f32 %v229, %v300
  %302 = vmatmul.bf16.gmra.mxu0 %v206
  %v303 = vpop.f32.mrf.mxu0
  %v304 = vadd.f32 %v229, %v303
  %v305 = vpop.f32.mrf.mxu0
  %v306 = vadd.f32 %v229, %v305
  %307 = vmatmul.bf16.gmra.mxu0 %v207
  %v308 = vpop.f32.mrf.mxu0
  %v309 = vadd.f32 %v229, %v308
  %v310 = vpop.f32.mrf.mxu0
  %v311 = vadd.f32 %v229, %v310
  %312 = vmatmul.bf16.gmra.mxu0 %v208
  %v313 = vpop.f32.mrf.mxu0
  %v314 = vadd.f32 %v229, %v313
  %v315 = vpop.f32.mrf.mxu0
  %v316 = vadd.f32 %v229, %v315
  %317 = vmatmul.bf16.gmra.mxu0 %v209
  %v318 = vpop.f32.mrf.mxu0
  %v319 = vadd.f32 %v229, %v318
  %v320 = vpop.f32.mrf.mxu0
  %v321 = vadd.f32 %v229, %v320
  %322 = vmatmul.bf16.gmra.mxu0 %v210
  %v323 = vpop.f32.mrf.mxu0
  %v324 = vadd.f32 %v229, %v323
  %v325 = vpop.f32.mrf.mxu0
  %v326 = vadd.f32 %v229, %v325
  %327 = vdwg.mxu0
  %v328 = vtanh.pop %v289
  %v329 = vtanh.pop %v291
  %v330 = vtanh.pop %v294
  %v331 = vtanh.pop %v296
  %v332 = vtanh.pop %v299
  %v333 = vtanh.pop %v301
  %v334 = vtanh.pop %v304
  %v335 = vtanh.pop %v306
  %v336 = vtanh.pop %v309
  %v337 = vtanh.pop %v311
  %v338 = vtanh.pop %v314
  %v339 = vtanh.pop %v316
  %v340 = vtanh.pop %v319
  %v341 = vtanh.pop %v321
  %v342 = vtanh.pop %v324
  %v343 = vtanh.pop %v326
  %344 = vst [vmem:[%s5] sm:$0xff] %v328
  %345 = vst [vmem:[%s5 + $0x8] sm:$0xff] %v329
  %346 = vst [vmem:[%s5 + $0x10] sm:$0xff] %v330
  %347 = vst [vmem:[%s5 + $0x18] sm:$0xff] %v331
  %348 = vst [vmem:[%s5 + $0x20] sm:$0xff] %v332
  %349 = vst [vmem:[%s5 + $0x28] sm:$0xff] %v333
  %350 = vst [vmem:[%s5 + $0x30] sm:$0xff] %v334
  %351 = vst [vmem:[%s5 + $0x38] sm:$0xff] %v335
  %352 = vst [vmem:[%s5 + $0x40] sm:$0xff] %v336
  %353 = vst [vmem:[%s5 + $0x48] sm:$0xff] %v337
  %354 = vst [vmem:[%s5 + $0x50] sm:$0xff] %v338
  %355 = vst [vmem:[%s5 + $0x58] sm:$0xff] %v339
  %356 = vst [vmem:[%s5 + $0x60] sm:$0xff] %v340
  %357 = vst [vmem:[%s5 + $0x68] sm:$0xff] %v341
  %358 = vst [vmem:[%s5 + $0x70] sm:$0xff] %v342
  %359 = vst [vmem:[%s5 + $0x78] sm:$0xff] %v343
  // Predicated region
  $region22: #{img_attention_encoder.1} parent=0 // pred_check
    _
  $region23: #{img_attention_encoder.1} parent=0 // pred_check_branch
    %361 = sbr.rel (0) target = $region25
  $region24: #{img_attention_encoder.1} parent=0 // pred_region
    _
  $region25: #{img_attention_encoder.1} parent=0 // pred_fallthru
    _
  // Predicated region
  $region26: #{img_attention_encoder.1} parent=0 // pred_check
    _
  $region27: #{img_attention_encoder.1} parent=0 // pred_check_branch
    %363 = sbr.rel (0) target = $region29
  $region28: #{img_attention_encoder.1} parent=0 // pred_region
    _
  $region29: #{img_attention_encoder.1} parent=0 // pred_fallthru
    _

</llo_original>
